<compile_context>
chip_gen: v5e
topology: v5e:2x2
jax: 0.10.0
libtpu: 0.0.40
codegen_flags: <defaults>
</compile_context>

<pallas_src>
import random
import numpy as np
import jax
import jax.numpy as jnp
from jax.experimental import pallas as pl
from jax.experimental.pallas import tpu as pltpu


W_POS = 1.0
W_MASK = 1.0


# ----------------------------------------------------------------------------
# Anchor construction + target generation (host-side numpy, same as the module)
# ----------------------------------------------------------------------------
class RPNTargets:
    def __init__(self, img_size=256, feat_size=16, stride=16):
        self.feat_size = feat_size
        self.stride = stride
        anw, anh = np.meshgrid([1.0, 0.5, 0.25], [1.0, 0.5, 0.25])
        anw = anw.ravel() * img_size
        anh = anh.ravel() * img_size
        anw = anw[..., None, None]
        anh = anh[..., None, None]
        an_xct, an_yct = np.meshgrid(range(feat_size), range(feat_size))
        an_xct = an_xct * stride
        an_yct = an_yct * stride
        self.anw = np.tile(anw, (1, feat_size, feat_size))
        self.anh = np.tile(anh, (1, feat_size, feat_size))
        self.an_xct = np.tile(an_xct[None, ...], (9, 1, 1))
        self.an_yct = np.tile(an_yct[None, ...], (9, 1, 1))
        self.an_xmin = an_xct - anw / 2
        self.an_ymin = an_yct - anh / 2
        self.an_xmax = an_xct + anw / 2
        self.an_ymax = an_yct + anh / 2
        self.pos_th = 0.7
        self.neg_th = 0.3
        self.w_pos = W_POS
        self.w_mask = W_MASK

    def iou_gt_anchor(self, gt_box):
        K = gt_box.shape[0]
        fs = self.feat_size
        shape = (K, 9, fs, fs)
        gt_xmin = np.broadcast_to(gt_box[:, 0][..., None, None, None], shape)
        gt_ymin = np.broadcast_to(gt_box[:, 1][..., None, None, None], shape)
        gt_xmax = np.broadcast_to(gt_box[:, 2][..., None, None, None], shape)
        gt_ymax = np.broadcast_to(gt_box[:, 3][..., None, None, None], shape)
        an_xmin = np.broadcast_to(self.an_xmin[None, ...], shape)
        an_ymin = np.broadcast_to(self.an_ymin[None, ...], shape)
        an_xmax = np.broadcast_to(self.an_xmax[None, ...], shape)
        an_ymax = np.broadcast_to(self.an_ymax[None, ...], shape)
        big_min_x = np.maximum(an_xmin, gt_xmin)
        big_min_y = np.maximum(an_ymin, gt_ymin)
        small_max_x = np.minimum(an_xmax, gt_xmax)
        small_max_y = np.minimum(an_ymax, gt_ymax)
        overlap_x = np.clip(small_max_x - big_min_x, 0.0, None)
        overlap_y = np.clip(small_max_y - big_min_y, 0.0, None)
        i_area = overlap_x * overlap_y
        u_area = ((an_xmax - an_xmin) * (an_ymax - an_ymin)
                  + (gt_xmax - gt_xmin) * (gt_ymax - gt_ymin) - i_area)
        return i_area / (u_area + 1e-08)

    def bbox2target(self, gt_box):
        K = gt_box.shape[0]
        fs = self.feat_size
        iou = self.iou_gt_anchor(gt_box).reshape((K, -1))
        idx_best_ans = np.unique(iou.argmax(1))
        maxiou = iou.max(0)
        maxiou[idx_best_ans] = -1
        gt_ans = iou.argmax(0)
        gt_best_ans = gt_ans[idx_best_ans]
        if len(idx_best_ans) < 128:
            idx_pos_ans = np.where(maxiou > self.pos_th)[0]
            gt_pos_ans = gt_ans[idx_pos_ans]
            if len(idx_pos_ans) > 128 - len(idx_best_ans):
                _rand_idx = random.sample(range(len(idx_pos_ans)),
                                          128 - len(idx_best_ans))
                idx_pos_ans = idx_pos_ans[_rand_idx]
                gt_pos_ans = gt_pos_ans[_rand_idx]
            idx_pos_ans = np.concatenate((idx_best_ans, idx_pos_ans), 0)
            gt_pos_ans = np.concatenate((gt_best_ans, gt_pos_ans), 0)
        else:
            _rand_idx = random.sample(range(len(idx_best_ans)), 128)
            idx_pos_ans = idx_best_ans[_rand_idx]
            gt_pos_ans = gt_best_ans[_rand_idx]
        idx_neg_ans = np.where((maxiou > 0) & (maxiou < self.neg_th))[0]
        idx_neg_ans = np.random.choice(idx_neg_ans, 256 - len(idx_pos_ans))

        mask_pos_ans = np.zeros(9 * fs * fs, dtype=bool)
        mask_pos_ans[idx_pos_ans] = True
        mask_pos_ans = mask_pos_ans.reshape(9, fs, fs)
        mask_neg_ans = np.zeros(9 * fs * fs, dtype=bool)
        mask_neg_ans[idx_neg_ans] = True
        mask_neg_ans = mask_neg_ans.reshape(9, fs, fs)

        gt_xmin, gt_ymin = gt_box[:, 0], gt_box[:, 1]
        gt_xmax, gt_ymax = gt_box[:, 2], gt_box[:, 3]
        gt_xct = (gt_xmin[gt_pos_ans] + gt_xmax[gt_pos_ans]) / 2
        gt_yct = (gt_ymin[gt_pos_ans] + gt_ymax[gt_pos_ans]) / 2
        gtw = gt_xmax[gt_pos_ans] - gt_xmin[gt_pos_ans]
        gth = gt_ymax[gt_pos_ans] - gt_ymin[gt_pos_ans]
        an_xct = self.an_xct[mask_pos_ans]
        an_yct = self.an_yct[mask_pos_ans]
        anw = self.anw[mask_pos_ans]
        anh = self.anh[mask_pos_ans]
        tx = (gt_xct - an_xct) / anw
        ty = (gt_yct - an_yct) / anh
        assert (gtw <= 0).sum() == 0
        assert (gth <= 0).sum() == 0
        tw = np.log(gtw / anw)
        th = np.log(gth / anh)

        gt_mask = np.ones(mask_pos_ans.shape, dtype=np.int64) - 2
        gt_mask[mask_pos_ans] = 1
        gt_mask[mask_neg_ans] = 0
        return gt_mask, (tx, ty, tw, th), mask_pos_ans


# ----------------------------------------------------------------------------
# Pallas kernel: binary-CE (ignore_index=-1) + masked smooth-L1, single block.
# ----------------------------------------------------------------------------
def _rpn_loss_kernel(gm_ref, logits_ref, ppos_ref, tpos_ref, out_ref):
    # gm_ref: (S, L) int32 in {-1, 0, 1}; logits_ref: (2, S, L);
    # ppos_ref / tpos_ref: (4, S, L); out_ref: (1, 1).
    gm = gm_ref[...]
    gt_cls = (gm == 1).astype(jnp.float32)     # positives (also the pos-loss mask)
    m_val = (gm != -1).astype(jnp.float32)     # non-ignored anchors for the CE

    # 2-class softmax CE rewritten elementwise (no cross-sublane reduce, no concat):
    #   nll = softplus(z * (1 - 2*gt_cls)),  z = logit_fg - logit_bg
    # stable softplus(x) = max(x, 0) + log(1 + exp(-|x|))
    z = logits_ref[1] - logits_ref[0]          # (S, L)
    u = z * (1.0 - 2.0 * gt_cls)
    nll = jnp.maximum(u, 0.0) + jnp.log(1.0 + jnp.exp(-jnp.abs(u)))
    ce_sum = jnp.sum(nll * m_val, keepdims=True)       # (1, 1)
    n_val = jnp.sum(m_val, keepdims=True)              # (1, 1)

    # Smooth-L1 over positive anchors. tpos is zero off the positive set, and the
    # mask kills those terms, so sum/n_pos == sum of 4 per-component means.
    d = ppos_ref[...] - tpos_ref[...]                  # (4, S, L)
    ad = jnp.abs(d)
    sl1 = jnp.where(ad < 1.0, 0.5 * d * d, ad - 0.5)
    sl1_2d = jnp.sum(sl1, axis=0) * gt_cls             # (S, L), cheap VPU adds
    pos_sum = jnp.sum(sl1_2d, keepdims=True)           # (1, 1)
    n_pos = jnp.sum(gt_cls, keepdims=True)             # (1, 1)

    # Normalize with EUP reciprocals (approx is within the test tolerance).
    out_ref[...] = (W_POS * pos_sum * pl.reciprocal(n_pos, approx=True)
                    + W_MASK * ce_sum * pl.reciprocal(n_val, approx=True))


def rpn_loss_pallas(pred_mask, pred_pos, gt_mask_flat, tgt_pos_full):
    """pred_mask (1,2,9,H,W), pred_pos (1,4,9,H,W), gt_mask_flat (A,) int32,
    tgt_pos_full (4, A) f32 (targets scattered to the anchor grid, 0 elsewhere)."""
    A = gt_mask_flat.shape[0]
    L = 128
    assert A % L == 0, "anchor count must be a multiple of 128 for the dense layout"
    S = A // L

    logits = pred_mask.reshape(2, S, L).astype(jnp.float32)
    ppos = pred_pos.reshape(4, S, L).astype(jnp.float32)
    tpos = tgt_pos_full.reshape(4, S, L).astype(jnp.float32)
    gm = gt_mask_flat.reshape(S, L).astype(jnp.int32)

    vmem = pl.BlockSpec(memory_space=pltpu.MemorySpace.VMEM)
    out = pl.pallas_call(
        _rpn_loss_kernel,
        out_shape=jax.ShapeDtypeStruct((1, 1), jnp.float32),
        in_specs=[vmem, vmem, vmem, vmem],
        out_specs=vmem,
    )(gm, logits, ppos, tpos)
    return out[0, 0]


# ----------------------------------------------------------------------------
# Pure-numpy reference (mirrors F.cross_entropy + F.smooth_l1_loss semantics)
# ----------------------------------------------------------------------------
def reference_loss(pred_mask, pred_pos, gt_mask, gt_pos, mask_pos_ans):
    A = gt_mask.size
    flat = np.asarray(pred_mask).reshape(2, A).astype(np.float64)
    m = flat.max(0)
    lse = m + np.log(np.exp(flat - m).sum(0))
    logp = flat - lse
    gm = gt_mask.reshape(-1)
    valid = gm != -1
    cls = np.where(valid, gm, 0)
    ce = -logp[cls, np.arange(A)][valid].mean()

    sorted_pos = np.where(mask_pos_ans.reshape(-1))[0]
    ppos = np.asarray(pred_pos).reshape(4, A).astype(np.float64)
    pos_loss = 0.0
    for c in range(4):
        pred_c = ppos[c, sorted_pos]
        d = pred_c - gt_pos[c]
        ad = np.abs(d)
        l = np.where(ad < 1.0, 0.5 * d * d, ad - 0.5)
        pos_loss += l.mean()
    return W_POS * pos_loss + W_MASK * ce


if __name__ == "__main__":
    random.seed(0)
    np.random.seed(0)

    IMG, FEAT, STRIDE = 256, 16, 16
    A = 9 * FEAT * FEAT          # 2304 = 18 * 128

    # deterministic "predictions" (would come from the RPN head)
    key = jax.random.PRNGKey(0)
    k1, k2 = jax.random.split(key)
    pred_mask = jax.random.normal(k1, (1, 2, 9, FEAT, FEAT), dtype=jnp.float32)
    pred_pos = jax.random.normal(k2, (1, 4, 9, FEAT, FEAT), dtype=jnp.float32) * 0.1

    # deterministic ground-truth boxes (1, K, 4) -> squeeze(0) like the module
    gt_box = np.array([[[30.0, 40.0, 150.0, 180.0],
                        [60.0, 20.0, 120.0, 100.0],
                        [140.0, 150.0, 230.0, 250.0]]], dtype=np.float32)

    tgt_gen = RPNTargets(img_size=IMG, feat_size=FEAT, stride=STRIDE)
    gt_mask, gt_pos, mask_pos_ans = tgt_gen.bbox2target(gt_box[0])

    # Scatter (tx,ty,tw,th) to the full anchor grid, preserving the exact
    # pred[_msk] (sorted flat order) <-> gt_pos (idx_pos_ans order) pairing of
    # the PyTorch module.  INVARIANT: zero off the positive set (see kernel).
    sorted_pos = np.where(mask_pos_ans.reshape(-1))[0]
    tgt_pos_full = np.zeros((4, A), dtype=np.float32)
    for c in range(4):
        tgt_pos_full[c, sorted_pos] = gt_pos[c]

    gt_mask_flat = jnp.asarray(gt_mask.reshape(-1).astype(np.int32))
    tgt_pos_full_j = jnp.asarray(tgt_pos_full)

    loss = rpn_loss_pallas(pred_mask, pred_pos, gt_mask_flat, tgt_pos_full_j)
    loss = jax.block_until_ready(loss)

    ref = reference_loss(pred_mask, pred_pos, gt_mask, gt_pos, mask_pos_ans)
    assert np.isfinite(float(loss))
    # tolerance covers the approx (EUP) reciprocals used for the mean normalizers
    np.testing.assert_allclose(float(loss), ref, rtol=1e-3, atol=1e-3)

    print("KERNEL_OK")
</pallas_src>

<mosaic_0001>
module attributes {stable_mosaic.version = 11 : i64} {
  func.func @_rpn_loss_kernel(%arg0: memref<18x128xi32, #tpu.memory_space<vmem>>, %arg1: memref<2x18x128xf32, #tpu.memory_space<vmem>>, %arg2: memref<4x18x128xf32, #tpu.memory_space<vmem>>, %arg3: memref<4x18x128xf32, #tpu.memory_space<vmem>>, %arg4: memref<1x1xf32, #tpu.memory_space<vmem>>) attributes {dimension_semantics = [], scalar_prefetch = 0 : i64, scratch_operands = 0 : i64, tpu.core_type = #tpu.core_type<tc>} {
    %c0 = arith.constant 0 : index
    %c0_0 = arith.constant 0 : index
    %0 = vector.load %arg0[%c0, %c0_0] : memref<18x128xi32, #tpu.memory_space<vmem>>, vector<18x128xi32>
    %c1_i32 = arith.constant 1 : i32
    %1 = vector.broadcast %c1_i32 : i32 to vector<18x128xi32>
    %2 = arith.cmpi eq, %0, %1 : vector<18x128xi32>
    %3 = arith.extui %2 : vector<18x128xi1> to vector<18x128xi32>
    %4 = arith.sitofp %3 : vector<18x128xi32> to vector<18x128xf32>
    %c-1_i32 = arith.constant -1 : i32
    %5 = vector.broadcast %c-1_i32 : i32 to vector<18x128xi32>
    %6 = arith.cmpi ne, %0, %5 : vector<18x128xi32>
    %7 = arith.extui %6 : vector<18x128xi1> to vector<18x128xi32>
    %8 = arith.sitofp %7 : vector<18x128xi32> to vector<18x128xf32>
    %c1 = arith.constant 1 : index
    %c0_1 = arith.constant 0 : index
    %c0_2 = arith.constant 0 : index
    %9 = vector.load %arg1[%c1, %c0_1, %c0_2] : memref<2x18x128xf32, #tpu.memory_space<vmem>>, vector<1x18x128xf32>
    %10 = vector.shape_cast %9 : vector<1x18x128xf32> to vector<18x128xf32>
    %c0_3 = arith.constant 0 : index
    %c0_4 = arith.constant 0 : index
    %c0_5 = arith.constant 0 : index
    %11 = vector.load %arg1[%c0_3, %c0_4, %c0_5] : memref<2x18x128xf32, #tpu.memory_space<vmem>>, vector<1x18x128xf32>
    %12 = vector.shape_cast %11 : vector<1x18x128xf32> to vector<18x128xf32>
    %13 = arith.subf %10, %12 : vector<18x128xf32>
    %cst = arith.constant 2.000000e+00 : f32
    %14 = vector.broadcast %cst : f32 to vector<18x128xf32>
    %15 = arith.mulf %14, %4 : vector<18x128xf32>
    %cst_6 = arith.constant 1.000000e+00 : f32
    %16 = vector.broadcast %cst_6 : f32 to vector<18x128xf32>
    %17 = arith.subf %16, %15 : vector<18x128xf32>
    %18 = arith.mulf %13, %17 : vector<18x128xf32>
    %cst_7 = arith.constant 0.000000e+00 : f32
    %19 = vector.broadcast %cst_7 : f32 to vector<18x128xf32>
    %20 = arith.maximumf %18, %19 : vector<18x128xf32>
    %21 = math.absf %18 : vector<18x128xf32>
    %cst_8 = arith.constant 0.000000e+00 : f32
    %22 = vector.broadcast %cst_8 : f32 to vector<18x128xf32>
    %23 = arith.subf %22, %21 : vector<18x128xf32>
    %24 = math.exp %23 : vector<18x128xf32>
    %cst_9 = arith.constant 1.000000e+00 : f32
    %25 = vector.broadcast %cst_9 : f32 to vector<18x128xf32>
    %26 = arith.addf %25, %24 : vector<18x128xf32>
    %27 = math.log %26 : vector<18x128xf32>
    %28 = arith.addf %20, %27 : vector<18x128xf32>
    %29 = arith.mulf %28, %8 : vector<18x128xf32>
    %30 = vector.shape_cast %29 : vector<18x128xf32> to vector<1x18x128xf32>
    %cst_10 = arith.constant dense<0.000000e+00> : vector<1xf32>
    %31 = vector.multi_reduction <add>, %30, %cst_10 [1, 2] : vector<1x18x128xf32> to vector<1xf32>
    %32 = vector.shape_cast %31 : vector<1xf32> to vector<1x1x1xf32>
    %33 = vector.extract %32[0, 0, 0] : f32 from vector<1x1x1xf32>
    %34 = vector.broadcast %33 : f32 to vector<1x1xf32>
    %35 = vector.shape_cast %8 : vector<18x128xf32> to vector<1x18x128xf32>
    %cst_11 = arith.constant dense<0.000000e+00> : vector<1xf32>
    %36 = vector.multi_reduction <add>, %35, %cst_11 [1, 2] : vector<1x18x128xf32> to vector<1xf32>
    %37 = vector.shape_cast %36 : vector<1xf32> to vector<1x1x1xf32>
    %38 = vector.extract %37[0, 0, 0] : f32 from vector<1x1x1xf32>
    %39 = vector.broadcast %38 : f32 to vector<1x1xf32>
    %c0_12 = arith.constant 0 : index
    %c0_13 = arith.constant 0 : index
    %c0_14 = arith.constant 0 : index
    %40 = vector.load %arg2[%c0_12, %c0_13, %c0_14] : memref<4x18x128xf32, #tpu.memory_space<vmem>>, vector<4x18x128xf32>
    %c0_15 = arith.constant 0 : index
    %c0_16 = arith.constant 0 : index
    %c0_17 = arith.constant 0 : index
    %41 = vector.load %arg3[%c0_15, %c0_16, %c0_17] : memref<4x18x128xf32, #tpu.memory_space<vmem>>, vector<4x18x128xf32>
    %42 = arith.subf %40, %41 : vector<4x18x128xf32>
    %43 = math.absf %42 : vector<4x18x128xf32>
    %cst_18 = arith.constant 1.000000e+00 : f32
    %44 = vector.broadcast %cst_18 : f32 to vector<4x18x128xf32>
    %45 = arith.cmpf olt, %43, %44 : vector<4x18x128xf32>
    %cst_19 = arith.constant 5.000000e-01 : f32
    %46 = vector.broadcast %cst_19 : f32 to vector<4x18x128xf32>
    %47 = arith.mulf %46, %42 : vector<4x18x128xf32>
    %48 = arith.mulf %47, %42 : vector<4x18x128xf32>
    %cst_20 = arith.constant 5.000000e-01 : f32
    %49 = vector.broadcast %cst_20 : f32 to vector<4x18x128xf32>
    %50 = arith.subf %43, %49 : vector<4x18x128xf32>
    %51 = arith.select %45, %48, %50 : vector<4x18x128xi1>, vector<4x18x128xf32>
    %cst_21 = arith.constant dense<0.000000e+00> : vector<18x128xf32>
    %52 = vector.multi_reduction <add>, %51, %cst_21 [0] : vector<4x18x128xf32> to vector<18x128xf32>
    %53 = arith.mulf %52, %4 : vector<18x128xf32>
    %54 = vector.shape_cast %53 : vector<18x128xf32> to vector<1x18x128xf32>
    %cst_22 = arith.constant dense<0.000000e+00> : vector<1xf32>
    %55 = vector.multi_reduction <add>, %54, %cst_22 [1, 2] : vector<1x18x128xf32> to vector<1xf32>
    %56 = vector.shape_cast %55 : vector<1xf32> to vector<1x1x1xf32>
    %57 = vector.extract %56[0, 0, 0] : f32 from vector<1x1x1xf32>
    %58 = vector.broadcast %57 : f32 to vector<1x1xf32>
    %59 = vector.shape_cast %4 : vector<18x128xf32> to vector<1x18x128xf32>
    %cst_23 = arith.constant dense<0.000000e+00> : vector<1xf32>
    %60 = vector.multi_reduction <add>, %59, %cst_23 [1, 2] : vector<1x18x128xf32> to vector<1xf32>
    %61 = vector.shape_cast %60 : vector<1xf32> to vector<1x1x1xf32>
    %62 = vector.extract %61[0, 0, 0] : f32 from vector<1x1x1xf32>
    %63 = vector.broadcast %62 : f32 to vector<1x1xf32>
    %cst_24 = arith.constant 1.000000e+00 : f32
    %64 = vector.broadcast %cst_24 : f32 to vector<1x1xf32>
    %65 = arith.mulf %64, %58 : vector<1x1xf32>
    %66 = tpu.reciprocal %63 {approx = true} : vector<1x1xf32> -> vector<1x1xf32>
    %67 = arith.mulf %65, %66 : vector<1x1xf32>
    %cst_25 = arith.constant 1.000000e+00 : f32
    %68 = vector.broadcast %cst_25 : f32 to vector<1x1xf32>
    %69 = arith.mulf %68, %34 : vector<1x1xf32>
    %70 = tpu.reciprocal %39 {approx = true} : vector<1x1xf32> -> vector<1x1xf32>
    %71 = arith.mulf %69, %70 : vector<1x1xf32>
    %72 = arith.addf %67, %71 : vector<1x1xf32>
    %c0_26 = arith.constant 0 : index
    %c0_27 = arith.constant 0 : index
    %73 = vector.load %arg4[%c0_26, %c0_27] : memref<1x1xf32, #tpu.memory_space<vmem>>, vector<1x1xf32>
    tpu.vector_store %arg4[%c0_26, %c0_27], %72 {strides = array<i32>} : memref<1x1xf32, #tpu.memory_space<vmem>>, vector<1x1xf32>,
    return
  }
}

</mosaic_0001>

<llo_original>
// kernel: tpu_custom_call.1
$region0: #{tpu_custom_call.1}
  #allocation0 [shape = 'u32[]', space=smem, size = 0x4, offset = 0x4, fixed_abs, tag = 'smem constant byte address 0x4 - core index']
  #allocation1 [shape = 'u32[72,128]{1,0:T(1,128)}', space=vmem, size = 0x9000, scoped, tag = 'internal scratch']
  %s0 = inlined_call_operand.vmem [shape: s32[18,128], index: 0, kind: input, shape index: {}]
  %s1 = inlined_call_operand.vmem [shape: f32[2,18,128], index: 1, kind: input, shape index: {}]
  %s2 = inlined_call_operand.vmem [shape: f32[4,18,128], index: 2, kind: input, shape index: {}]
  %s3 = inlined_call_operand.vmem [shape: f32[4,18,128], index: 3, kind: input, shape index: {}]
  %s4 = inlined_call_operand.hbm [shape: f32[1,1], index: 4, kind: output, shape index: {}]
  %s5 = sld [smem:[#allocation0]]
  $region26: #{tpu_custom_call.1} parent=0
    _
  %s7 = ssub.s32 1, %s5
  %s8 = scalar_select 0, %s7, %s5
  $region1: #{tpu_custom_call.1} parent=0
    #allocation2 [shape = 'u8[512]{0}', space=vmem, size = 0x400, scoped, tag = 'output window, operand 0, single buffered']
    #allocation3 [shape = 's32[1]{0}', space=sflag, size = 0x4, scoped, tag = 'scoped memory for tpu_custom_call.1']
    %9 = vsyncpa [#allocation3], 0
    // Predicated region
    $region2: #{tpu_custom_call.1} parent=1 // pred_check
      _
    $region3: #{tpu_custom_call.1} parent=1 // pred_check_branch
      %11 = sbr.rel (0) target = $region5
    $region4: #{tpu_custom_call.1} parent=1 // pred_region
      _
    $region5: #{tpu_custom_call.1} parent=1 // pred_fallthru
      _
    // Predicated region
    $region6: #{tpu_custom_call.1} parent=1 // pred_check
      _
    $region7: #{tpu_custom_call.1} parent=1 // pred_check_branch
      %13 = sbr.rel (0) target = $region9
    $region8: #{tpu_custom_call.1} parent=1 // pred_region
      _
    $region9: #{tpu_custom_call.1} parent=1 // pred_fallthru
      _
    // Predicated region
    $region10: #{tpu_custom_call.1} parent=1 // pred_check
      _
    $region11: #{tpu_custom_call.1} parent=1 // pred_check_branch
      %15 = sbr.rel (0) target = $region13
    $region12: #{tpu_custom_call.1} parent=1 // pred_region
      _
    $region13: #{tpu_custom_call.1} parent=1 // pred_fallthru
      _
    // Predicated region
    $region14: #{tpu_custom_call.1} parent=1 // pred_check
      _
    $region15: #{tpu_custom_call.1} parent=1 // pred_check_branch
      %17 = sbr.rel (0) target = $region17
    $region16: #{tpu_custom_call.1} parent=1 // pred_region
      _
    $region17: #{tpu_custom_call.1} parent=1 // pred_fallthru
      _
    %v18 = vld [vmem:[%s0] sm:$0xff]
    %v19 = vld [vmem:[%s0 + $0x8] sm:$0xff]
    %v20 = vld [vmem:[%s0 + $0x10] sm:$0x3]
    %vm21 = vcmp.eq.s32.totalorder %v18, 1
    %vm22 = vcmp.eq.s32.totalorder %v19, 1
    %vm23 = vcmp.eq.s32.totalorder %v20, 1
    %v24 = vsel %vm21, 1, 0
    %v25 = vsel %vm22, 1, 0
    %v26 = vsel %vm23, 1, 0
    %v27 = vcvt.s32.f32 %v24
    %v28 = vcvt.s32.f32 %v25
    %v29 = vcvt.s32.f32 %v26
    %vm30 = vcmp.ne.s32.totalorder %v18, 4294967295
    %vm31 = vcmp.ne.s32.totalorder %v19, 4294967295
    %vm32 = vcmp.ne.s32.totalorder %v20, 4294967295
    %v33 = vsel %vm30, 1, 0
    %v34 = vsel %vm31, 1, 0
    %v35 = vsel %vm32, 1, 0
    %v36 = vcvt.s32.f32 %v33
    %v37 = vcvt.s32.f32 %v34
    %v38 = vcvt.s32.f32 %v35
    %s39 = scalar_lea.vmem %s1, 24
    %v40 = vld [vmem:[%s39] sm:$0xff]
    %v41 = vld [vmem:[%s39 + $0x8] sm:$0xff]
    %v42 = vld [vmem:[%s39 + $0x10] sm:$0x3]
    %v43 = vld [vmem:[%s1] sm:$0xff]
    %v44 = vld [vmem:[%s1 + $0x8] sm:$0xff]
    %v45 = vld [vmem:[%s1 + $0x10] sm:$0x3]
    %v46 = vsub.f32 %v40, %v43
    %v47 = vsub.f32 %v41, %v44
    %v48 = vsub.f32 %v42, %v45
    %v49 = vmul.f32 %v27, 2.0
    %v50 = vmul.f32 %v28, 2.0
    %v51 = vmul.f32 %v29, 2.0
    %v52 = vsub.f32 1.0, %v49
    %v53 = vsub.f32 1.0, %v50
    %v54 = vsub.f32 1.0, %v51
    %v55 = vmul.f32 %v46, %v52
    %v56 = vmul.f32 %v47, %v53
    %v57 = vmul.f32 %v48, %v54
    %v58 = vmax.f32 %v55, 0.0
    %v59 = vmax.f32 %v56, 0.0
    %v60 = vmax.f32 %v57, 0.0
    %v61 = vand.u32 2147483647, %v55
    %v62 = vand.u32 2147483647, %v56
    %v63 = vand.u32 2147483647, %v57
    %v64 = vsub.f32 0.0, %v61
    %v65 = vsub.f32 0.0, %v62
    %v66 = vsub.f32 0.0, %v63
    %v67 = vmul.f32 %v64, 1.442695
    %v68 = vpow.pop %v67
    %v69 = vmul.f32 %v65, 1.442695
    %v70 = vpow.pop %v69
    %v71 = vmul.f32 %v66, 1.442695
    %v72 = vpow.pop %v71
    %v73 = vadd.f32 %v68, 1.0
    %v74 = vadd.f32 %v70, 1.0
    %v75 = vadd.f32 %v72, 1.0
    %v76 = vlog2.pop %v73
    %v77 = vmul.f32 %v76, 0.6931472
    %v78 = vlog2.pop %v74
    %v79 = vmul.f32 %v78, 0.6931472
    %v80 = vlog2.pop %v75
    %v81 = vmul.f32 %v80, 0.6931472
    %v82 = vadd.f32 %v58, %v77
    %v83 = vadd.f32 %v59, %v79
    %v84 = vadd.f32 %v60, %v81
    %v85 = vmul.f32 %v82, %v36
    %v86 = vmul.f32 %v83, %v37
    %v87 = vmul.f32 %v84, %v38
    %v88 = vadd.f32 %v85, %v86
    %vm89 = vcmask 1041408
    %v90 = vsel %vm89, %v87, 0.0
    %v91 = vadd.f32 %v88, %v90
    %92 = vadd.xlane.f32.xlu0 %v91
    %v93 = vpop.xlane.xlu0 %92
    %v94 = vrot.slane %v93, 4
    %v95 = vadd.f32 %v93, %v94
    %v96 = vrot.slane %v95, 2
    %v97 = vadd.f32 %v95, %v96
    %v98 = vrot.slane %v97, 1
    %v99 = vadd.f32 %v97, %v98
    %s100 = vtos %v99
    %v101 = vstv %s100
    %v102 = vadd.f32 %v36, %v37
    %v103 = vsel %vm89, %v38, 0.0
    %v104 = vadd.f32 %v102, %v103
    %105 = vadd.xlane.f32.xlu0 %v104
    %v106 = vpop.xlane.xlu0 %105
    %v107 = vrot.slane %v106, 4
    %v108 = vadd.f32 %v106, %v107
    %v109 = vrot.slane %v108, 2
    %v110 = vadd.f32 %v108, %v109
    %v111 = vrot.slane %v110, 1
    %v112 = vadd.f32 %v110, %v111
    %s113 = vtos %v112
    %v114 = vstv %s113
    %v115 = vld [vmem:[%s2] sm:$0xff]
    %v116 = vld [vmem:[%s2 + $0x8] sm:$0xff]
    %v117 = vld [vmem:[%s2 + $0x10] sm:$0x3]
    %v118 = vld [vmem:[%s2 + $0x18] sm:$0xff]
    %v119 = vld [vmem:[%s2 + $0x20] sm:$0xff]
    %v120 = vld [vmem:[%s2 + $0x28] sm:$0x3]
    %v121 = vld [vmem:[%s2 + $0x30] sm:$0xff]
    %v122 = vld [vmem:[%s2 + $0x38] sm:$0xff]
    %v123 = vld [vmem:[%s2 + $0x40] sm:$0x3]
    %v124 = vld [vmem:[%s2 + $0x48] sm:$0xff]
    %v125 = vld [vmem:[%s2 + $0x50] sm:$0xff]
    %v126 = vld [vmem:[%s2 + $0x58] sm:$0x3]
    %v127 = vld [vmem:[%s3] sm:$0xff]
    %v128 = vld [vmem:[%s3 + $0x8] sm:$0xff]
    %v129 = vld [vmem:[%s3 + $0x10] sm:$0x3]
    %v130 = vld [vmem:[%s3 + $0x18] sm:$0xff]
    %v131 = vld [vmem:[%s3 + $0x20] sm:$0xff]
    %v132 = vld [vmem:[%s3 + $0x28] sm:$0x3]
    %v133 = vld [vmem:[%s3 + $0x30] sm:$0xff]
    %v134 = vld [vmem:[%s3 + $0x38] sm:$0xff]
    %v135 = vld [vmem:[%s3 + $0x40] sm:$0x3]
    %v136 = vld [vmem:[%s3 + $0x48] sm:$0xff]
    %v137 = vld [vmem:[%s3 + $0x50] sm:$0xff]
    %v138 = vld [vmem:[%s3 + $0x58] sm:$0x3]
    %v139 = vsub.f32 %v115, %v127
    %v140 = vsub.f32 %v116, %v128
    %v141 = vsub.f32 %v117, %v129
    %v142 = vsub.f32 %v118, %v130
    %v143 = vsub.f32 %v119, %v131
    %v144 = vsub.f32 %v120, %v132
    %v145 = vsub.f32 %v121, %v133
    %v146 = vsub.f32 %v122, %v134
    %v147 = vsub.f32 %v123, %v135
    %v148 = vsub.f32 %v124, %v136
    %v149 = vsub.f32 %v125, %v137
    %v150 = vsub.f32 %v126, %v138
    %v151 = vand.u32 2147483647, %v139
    %v152 = vand.u32 2147483647, %v140
    %v153 = vand.u32 2147483647, %v141
    %v154 = vand.u32 2147483647, %v142
    %v155 = vand.u32 2147483647, %v143
    %v156 = vand.u32 2147483647, %v144
    %v157 = vand.u32 2147483647, %v145
    %v158 = vand.u32 2147483647, %v146
    %v159 = vand.u32 2147483647, %v147
    %v160 = vand.u32 2147483647, %v148
    %v161 = vand.u32 2147483647, %v149
    %v162 = vand.u32 2147483647, %v150
    %vm163 = vcmp.lt.f32.partialorder %v151, 1.0
    %vm164 = vcmp.lt.f32.partialorder %v152, 1.0
    %vm165 = vcmp.lt.f32.partialorder %v153, 1.0
    %vm166 = vcmp.lt.f32.partialorder %v154, 1.0
    %vm167 = vcmp.lt.f32.partialorder %v155, 1.0
    %vm168 = vcmp.lt.f32.partialorder %v156, 1.0
    %vm169 = vcmp.lt.f32.partialorder %v157, 1.0
    %vm170 = vcmp.lt.f32.partialorder %v158, 1.0
    %vm171 = vcmp.lt.f32.partialorder %v159, 1.0
    %vm172 = vcmp.lt.f32.partialorder %v160, 1.0
    %vm173 = vcmp.lt.f32.partialorder %v161, 1.0
    %vm174 = vcmp.lt.f32.partialorder %v162, 1.0
    %v175 = vmul.f32 %v139, 0.5
    %v176 = vmul.f32 %v140, 0.5
    %v177 = vmul.f32 %v141, 0.5
    %v178 = vmul.f32 %v142, 0.5
    %v179 = vmul.f32 %v143, 0.5
    %v180 = vmul.f32 %v144, 0.5
    %v181 = vmul.f32 %v145, 0.5
    %v182 = vmul.f32 %v146, 0.5
    %v183 = vmul.f32 %v147, 0.5
    %v184 = vmul.f32 %v148, 0.5
    %v185 = vmul.f32 %v149, 0.5
    %v186 = vmul.f32 %v150, 0.5
    %v187 = vmul.f32 %v175, %v139
    %v188 = vmul.f32 %v176, %v140
    %v189 = vmul.f32 %v177, %v141
    %v190 = vmul.f32 %v178, %v142
    %v191 = vmul.f32 %v179, %v143
    %v192 = vmul.f32 %v180, %v144
    %v193 = vmul.f32 %v181, %v145
    %v194 = vmul.f32 %v182, %v146
    %v195 = vmul.f32 %v183, %v147
    %v196 = vmul.f32 %v184, %v148
    %v197 = vmul.f32 %v185, %v149
    %v198 = vmul.f32 %v186, %v150
    %v199 = vsub.f32 %v151, 0.5
    %v200 = vsub.f32 %v152, 0.5
    %v201 = vsub.f32 %v153, 0.5
    %v202 = vsub.f32 %v154, 0.5
    %v203 = vsub.f32 %v155, 0.5
    %v204 = vsub.f32 %v156, 0.5
    %v205 = vsub.f32 %v157, 0.5
    %v206 = vsub.f32 %v158, 0.5
    %v207 = vsub.f32 %v159, 0.5
    %v208 = vsub.f32 %v160, 0.5
    %v209 = vsub.f32 %v161, 0.5
    %v210 = vsub.f32 %v162, 0.5
    %v211 = vsel %vm163, %v187, %v199
    %v212 = vsel %vm164, %v188, %v200
    %v213 = vsel %vm165, %v189, %v201
    %v214 = vsel %vm166, %v190, %v202
    %v215 = vsel %vm167, %v191, %v203
    %v216 = vsel %vm168, %v192, %v204
    %v217 = vsel %vm169, %v193, %v205
    %v218 = vsel %vm170, %v194, %v206
    %v219 = vsel %vm171, %v195, %v207
    %v220 = vsel %vm172, %v196, %v208
    %v221 = vsel %vm173, %v197, %v209
    %v222 = vsel %vm174, %v198, %v210
    %v223 = vadd.f32 %v211, %v214
    %v224 = vadd.f32 %v223, %v217
    %v225 = vadd.f32 %v224, %v220
    %v226 = vadd.f32 %v212, %v215
    %v227 = vadd.f32 %v226, %v218
    %v228 = vadd.f32 %v227, %v221
    %v229 = vsel %vm89, %v213, 0.0
    %v230 = vsel %vm89, %v216, 0.0
    %v231 = vadd.f32 %v229, %v230
    %v232 = vsel %vm89, %v219, 0.0
    %v233 = vadd.f32 %v231, %v232
    %v234 = vsel %vm89, %v222, 0.0
    %v235 = vadd.f32 %v233, %v234
    %v236 = vmul.f32 %v225, %v27
    %v237 = vmul.f32 %v228, %v28
    %v238 = vmul.f32 %v235, %v29
    %v239 = vadd.f32 %v236, %v237
    %v240 = vsel %vm89, %v238, 0.0
    %v241 = vadd.f32 %v239, %v240
    %242 = vadd.xlane.f32.xlu0 %v241
    %v243 = vpop.xlane.xlu0 %242
    %v244 = vrot.slane %v243, 4
    %v245 = vadd.f32 %v243, %v244
    %v246 = vrot.slane %v245, 2
    %v247 = vadd.f32 %v245, %v246
    %v248 = vrot.slane %v247, 1
    %v249 = vadd.f32 %v247, %v248
    %s250 = vtos %v249
    %v251 = vstv %s250
    %v252 = vadd.f32 %v27, %v28
    %v253 = vsel %vm89, %v29, 0.0
    %v254 = vadd.f32 %v252, %v253
    %255 = vadd.xlane.f32.xlu0 %v254
    %v256 = vpop.xlane.xlu0 %255
    %v257 = vrot.slane %v256, 4
    %v258 = vadd.f32 %v256, %v257
    %v259 = vrot.slane %v258, 2
    %v260 = vadd.f32 %v258, %v259
    %v261 = vrot.slane %v260, 1
    %v262 = vadd.f32 %v260, %v261
    %s263 = vtos %v262
    %v264 = vstv %s263
    %v265 = vrcp.pop %v264
    %v266 = vmul.f32 %v251, %v265
    %v267 = vrcp.pop %v114
    %v268 = vmul.f32 %v101, %v267
    %v269 = vadd.f32 %v266, %v268
    %vm270 = vcmask 0
    %271 = vst.msk [vmem:[#allocation2] sm:$0x1] %vm270, %v269
    // Predicated region
    $region18: #{tpu_custom_call.1} parent=1 // pred_check
      _
    $region19: #{tpu_custom_call.1} parent=1 // pred_check_branch
      %273 = sbr.rel (0) target = $region21
    $region20: #{tpu_custom_call.1} parent=1 // pred_region
      %275 = vsyncadd [#allocation3], 0
      %s277 = sshll.u32 [#allocation2], 4
      %s278 = int_to_ptr.vmem [resolvable:$true] %s277
      %s279 = sshll.u32 %s4, 4
      %s280 = int_to_ptr.hbm [resolvable:$true] %s279
      %282 = dma.vmem_to_hbm [thread:$0]  %s278, 16, %s280, [#allocation3]
    $region21: #{tpu_custom_call.1} parent=1 // pred_fallthru
      _
    // Predicated region
    $region22: #{tpu_custom_call.1} parent=1 // pred_check
      _
    $region23: #{tpu_custom_call.1} parent=1 // pred_check_branch
      %284 = sbr.rel (0) target = $region25
    $region24: #{tpu_custom_call.1} parent=1 // pred_region
      %286 = dma.done [#allocation3], 16
    $region25: #{tpu_custom_call.1} parent=1 // pred_fallthru
      _
    %287 = vsyncpa [#allocation3], 1

</llo_original>
